<compile_context>
chip_gen: v5e
topology: v5e:2x2
jax: 0.10.0
libtpu: 0.0.40
codegen_flags: <defaults>
</compile_context>

<pallas_src>
import functools

import jax
import jax.numpy as jnp
from jax.experimental import pallas as pl
from jax.experimental.pallas import tpu as pltpu


def _round_up(x, m):
    return ((x + m - 1) // m) * m


def _pick_tile(requested, npad, cap=None):
    """Largest multiple of 128 that is <= min(requested, cap) and divides npad."""
    t = min(requested, npad if cap is None else cap)
    t = max(128, (t // 128) * 128)
    while npad % t:
        t -= 128
    return t


def _nll_kernel(lhs_ref, y_col_ref, y_row_ref, risk_row_ref, e_row_ref,
                out_ref, acc_ref):
    """Grid = (j_tiles, i_tiles); i (axis 1) is the reduction axis."""
    i = pl.program_id(1)

    @pl.when(i == 0)
    def _init():
        acc_ref[...] = jnp.zeros_like(acc_ref)

    y_i = y_col_ref[...]                       # (TI, 1)  survival times of the i-tile
    y_j = y_row_ref[...]                       # (1, TJ)  survival times of the j-tile

    # mask[a, b] = 1 if y_j[b] <= y_i[a] else 0 (matches torch mask; no subtract, so
    # no flush-to-zero tie misclassification).  Compare runs in f32 on the VPU; only
    # the dot operand is bf16 (0/1 is exact in bf16) -> single bf16 MXU pass.
    mask = (y_j <= y_i).astype(jnp.bfloat16)   # (TI, TJ)

    # MXU reduction over i.  bf16 LHS rows: 0 = hi(exp(risk)), 1 = ones, 2 = lo(exp).
    # acc[0]+acc[2] accumulates num_j at ~f32 accuracy, acc[1] accumulates den_j.
    acc_ref[...] += jnp.dot(lhs_ref[...], mask,
                            preferred_element_type=jnp.float32)   # (8, TJ)

    @pl.when(i == pl.num_programs(1) - 1)
    def _finalize():
        acc = acc_ref[...]
        num = acc[0:1, :] + acc[2:3, :]        # (1, TJ) hi + lo residual
        den = acc[1:2, :]                      # (1, TJ)
        # NOTE: 1e-45 is an f32 subnormal (flushed to 0 on TPU); kept for spec fidelity.
        # Harmless: the diagonal guarantees den >= 1 and num > 0.
        log_loss = jnp.log(num / den + jnp.float32(1e-45))
        out_ref[...] = (risk_row_ref[...] - log_loss) * e_row_ref[...]


def negative_log_likelihood(risk_pred, y, e, *, tile_i=1024, tile_j=1024):
    """risk_pred, y, e: (N, 1) arrays. Returns scalar f32 loss (Cox partial likelihood)."""
    risk = risk_pred.reshape(-1).astype(jnp.float32)
    yv = y.reshape(-1).astype(jnp.float32)
    ev = e.reshape(-1).astype(jnp.float32)
    n = risk.shape[0]

    # Pad to lane-aligned size; tiles are multiples of 128 dividing npad.
    npad = _round_up(max(n, 128), 128)
    ti = _pick_tile(tile_i, npad)
    # Keep j_tiles >= 2 whenever possible so the "parallel" axis can use both
    # TensorCores on v7x (no-op cost on v5e/v6e).
    tj_cap = npad // 2 if npad >= 256 else npad
    tj = _pick_tile(tile_j, npad, cap=tj_cap)

    # Shift-invariant exponent: exp(risk - max(risk)) cancels exactly in
    # risk_j - log_loss_j and keeps the numerator finite for any risk magnitude.
    shift = jnp.max(risk)
    risk_s = risk - shift

    neg_big = jnp.finfo(jnp.float32).min
    y_pad = jnp.full((npad,), neg_big, jnp.float32).at[:n].set(yv)
    risk_pad = jnp.zeros((npad,), jnp.float32).at[:n].set(risk_s)
    e_pad = jnp.zeros((npad,), jnp.float32).at[:n].set(ev)

    # Lane-dense row forms.
    y_row = y_pad.reshape(1, npad)
    risk_row = risk_pad.reshape(1, npad)
    e_row = e_pad.reshape(1, npad)
    # Tiny column form of y (per-i-tile (TI, 1) blocks; avoids in-kernel transpose).
    y_col = y_pad.reshape(npad, 1)

    # bf16 MXU LHS slab, built once (exp evaluated once, O(N) wrapper glue):
    #   row 0 = bf16(exp), row 1 = ones, row 2 = bf16(exp - f32(row0)), rows 3..7 = 0.
    exp_f32 = jnp.exp(risk_row)
    exp_hi = exp_f32.astype(jnp.bfloat16)
    exp_lo = (exp_f32 - exp_hi.astype(jnp.float32)).astype(jnp.bfloat16)
    lhs = jnp.concatenate(
        [exp_hi, jnp.ones_like(exp_hi), exp_lo, jnp.zeros((5, npad), jnp.bfloat16)],
        axis=0,
    )

    grid = (npad // tj, npad // ti)  # (j_tiles, i_tiles); reduction axis last

    contrib = pl.pallas_call(
        _nll_kernel,
        out_shape=jax.ShapeDtypeStruct((1, npad), jnp.float32),
        grid_spec=pltpu.PrefetchScalarGridSpec(
            num_scalar_prefetch=0,
            grid=grid,
            in_specs=[
                pl.BlockSpec((8, ti), lambda j, i: (0, i)),    # lhs (hi/ones/lo stack)
                pl.BlockSpec((ti, 1), lambda j, i: (i, 0)),    # y column (i-tile)
                pl.BlockSpec((1, tj), lambda j, i: (0, j)),    # y row (j-tile)
                pl.BlockSpec((1, tj), lambda j, i: (0, j)),    # risk row (j-tile)
                pl.BlockSpec((1, tj), lambda j, i: (0, j)),    # e row (j-tile)
            ],
            out_specs=pl.BlockSpec((1, tj), lambda j, i: (0, j)),
            scratch_shapes=[pltpu.VMEM((8, tj), jnp.float32)],  # num/den accumulator
        ),
        compiler_params=pltpu.CompilerParams(
            dimension_semantics=("parallel", "arbitrary"),
            # Above the scoped default, below v7x's 64 MiB physical VMEM; the bf16
            # (TI,TJ) mask intermediate + double-buffered inputs fit easily at 1024
            # tiles (~2-6 MiB) and still fit at 2048.
            vmem_limit_bytes=48 * 1024 * 1024,
        ),
        cost_estimate=pl.CostEstimate(
            flops=int(2 * 8 * npad * npad + 2 * npad * npad),
            transcendentals=int(npad),
            bytes_accessed=int(2 * 8 * npad + 4 * 5 * npad),
        ),
    )(lhs, y_col, y_row, risk_row, e_row)

    # Final O(N) reduction + normalization once, outside the tile loops.
    return -jnp.sum(contrib) / jnp.sum(ev)


def _reference_nll(risk_pred, y, e):
    n = risk_pred.shape[0]
    mask = jnp.where(y.reshape(1, n) - y.reshape(n, 1) > 0.0, 0.0, 1.0)
    log_loss = jnp.exp(risk_pred) * mask
    log_loss = jnp.sum(log_loss, axis=0) / jnp.sum(mask, axis=0) + 1e-45
    log_loss = jnp.log(log_loss).reshape(-1, 1)
    return -jnp.sum((risk_pred - log_loss) * e) / jnp.sum(e)


if __name__ == "__main__":
    key = jax.random.PRNGKey(0)
    k_risk, k_y, k_r2, k_y2, k_e2, k_r3, k_y3, k_e3 = jax.random.split(key, 8)

    # Small case matching the module's expected shapes.
    N = 8
    risk_pred = jax.random.normal(k_risk, (N, 1), dtype=jnp.float32)
    y = jax.random.uniform(k_y, (N, 1), dtype=jnp.float32) * 10.0     # survival times
    e = jnp.array([1, 0, 1, 1, 0, 1, 0, 1], dtype=jnp.float32).reshape(N, 1)  # events

    loss = jax.jit(negative_log_likelihood)(risk_pred, y, e)
    loss = jax.block_until_ready(loss)
    ref = _reference_nll(risk_pred, y, e)
    assert jnp.allclose(loss, ref, rtol=1e-4, atol=5e-5), (loss, ref)

    # Multi-tile case with small tiles (exercises the (j, i) grid, accumulator
    # init/finalize, hi/lo recombination and padding).
    N2 = 300
    risk2 = jax.random.normal(k_r2, (N2, 1), dtype=jnp.float32)
    y2 = jax.random.uniform(k_y2, (N2, 1), dtype=jnp.float32) * 10.0
    e2 = (jax.random.uniform(k_e2, (N2, 1)) > 0.4).astype(jnp.float32)

    loss2 = jax.jit(
        functools.partial(negative_log_likelihood, tile_i=128, tile_j=128)
    )(risk2, y2, e2)
    loss2 = jax.block_until_ready(loss2)
    ref2 = _reference_nll(risk2, y2, e2)
    assert jnp.allclose(loss2, ref2, rtol=1e-4, atol=1e-4), (loss2, ref2)

    # Medium case with default (large) tiles and the j_tiles>=2 cap active.
    N3 = 1000
    risk3 = jax.random.normal(k_r3, (N3, 1), dtype=jnp.float32)
    y3 = jax.random.uniform(k_y3, (N3, 1), dtype=jnp.float32) * 10.0
    e3 = (jax.random.uniform(k_e3, (N3, 1)) > 0.3).astype(jnp.float32)

    loss3 = jax.jit(negative_log_likelihood)(risk3, y3, e3)
    loss3 = jax.block_until_ready(loss3)
    ref3 = _reference_nll(risk3, y3, e3)
    assert jnp.allclose(loss3, ref3, rtol=1e-4, atol=2e-4), (loss3, ref3)

    print("KERNEL_OK")
</pallas_src>

<mosaic_0001>
module attributes {stable_mosaic.version = 11 : i64} {
  func.func @_nll_kernel(%arg0: i32, %arg1: i32, %arg2: memref<8x128xbf16, #tpu.memory_space<vmem>>, %arg3: memref<128x1xf32, #tpu.memory_space<vmem>>, %arg4: memref<1x128xf32, #tpu.memory_space<vmem>>, %arg5: memref<1x128xf32, #tpu.memory_space<vmem>>, %arg6: memref<1x128xf32, #tpu.memory_space<vmem>>, %arg7: memref<1x128xf32, #tpu.memory_space<vmem>>, %arg8: memref<8x128xf32, #tpu.memory_space<vmem>>) attributes {dimension_semantics = [#tpu.dimension_semantics<parallel>, #tpu.dimension_semantics<arbitrary>], iteration_bounds = array<i64: 1, 1>, scalar_prefetch = 0 : i64, scratch_operands = 1 : i64, tpu.core_type = #tpu.core_type<tc>, window_params = [{transform_indices = @transform_0, window_bounds = array<i64: 8, 128>}, {transform_indices = @transform_1, window_bounds = array<i64: 128, 1>}, {transform_indices = @transform_2, window_bounds = array<i64: 1, 128>}, {transform_indices = @transform_3, window_bounds = array<i64: 1, 128>}, {transform_indices = @transform_4, window_bounds = array<i64: 1, 128>}, {transform_indices = @transform_5, window_bounds = array<i64: 1, 128>}]} {
    %c0_i32 = arith.constant 0 : i32
    %0 = arith.cmpi eq, %arg1, %c0_i32 : i32
    %1 = arith.extui %0 : i1 to i32
    %c0_i32_0 = arith.constant 0 : i32
    %2 = arith.cmpi ne, %1, %c0_i32_0 : i32
    scf.if %2 {
      %cst_12 = arith.constant 0.000000e+00 : f32
      %19 = vector.broadcast %cst_12 : f32 to vector<8x128xf32>
      %c0_13 = arith.constant 0 : index
      %c0_14 = arith.constant 0 : index
      %20 = vector.load %arg8[%c0_13, %c0_14] : memref<8x128xf32, #tpu.memory_space<vmem>>, vector<8x128xf32>
      tpu.vector_store %arg8[%c0_13, %c0_14], %19 {strides = array<i32>} : memref<8x128xf32, #tpu.memory_space<vmem>>, vector<8x128xf32>,
    } else {
    }
    %c0 = arith.constant 0 : index
    %c0_1 = arith.constant 0 : index
    %3 = vector.load %arg3[%c0, %c0_1] : memref<128x1xf32, #tpu.memory_space<vmem>>, vector<128x1xf32>
    %c0_2 = arith.constant 0 : index
    %c0_3 = arith.constant 0 : index
    %4 = vector.load %arg4[%c0_2, %c0_3] : memref<1x128xf32, #tpu.memory_space<vmem>>, vector<1x128xf32>
    %5 = vector.broadcast %4 : vector<1x128xf32> to vector<128x128xf32>
    %6 = vector.broadcast %3 : vector<128x1xf32> to vector<128x128xf32>
    %7 = arith.cmpf ole, %5, %6 : vector<128x128xf32>
    %8 = arith.extui %7 : vector<128x128xi1> to vector<128x128xi32>
    %9 = arith.sitofp %8 : vector<128x128xi32> to vector<128x128xf32>
    %10 = arith.truncf %9 : vector<128x128xf32> to vector<128x128xbf16>
    %c0_4 = arith.constant 0 : index
    %c0_5 = arith.constant 0 : index
    %11 = vector.load %arg8[%c0_4, %c0_5] : memref<8x128xf32, #tpu.memory_space<vmem>>, vector<8x128xf32>
    %c0_6 = arith.constant 0 : index
    %c0_7 = arith.constant 0 : index
    %12 = vector.load %arg2[%c0_6, %c0_7] : memref<8x128xbf16, #tpu.memory_space<vmem>>, vector<8x128xbf16>
    %cst = arith.constant dense<0.000000e+00> : vector<8x128xf32>
    %13 = tpu.matmul %12, %10, %cst {dimension_numbers = #tpu.dot_dimension_numbers<[1], [0], [0], [1], [0, 0, 1, 1], [], []>} : vector<8x128xbf16>, vector<128x128xbf16>, vector<8x128xf32> -> vector<8x128xf32>
    %14 = arith.addf %11, %13 : vector<8x128xf32>
    %c0_8 = arith.constant 0 : index
    %c0_9 = arith.constant 0 : index
    %15 = vector.load %arg8[%c0_8, %c0_9] : memref<8x128xf32, #tpu.memory_space<vmem>>, vector<8x128xf32>
    tpu.vector_store %arg8[%c0_8, %c0_9], %14 {strides = array<i32>} : memref<8x128xf32, #tpu.memory_space<vmem>>, vector<8x128xf32>,
    %c0_i32_10 = arith.constant 0 : i32
    %16 = arith.cmpi eq, %arg1, %c0_i32_10 : i32
    %17 = arith.extui %16 : i1 to i32
    %c0_i32_11 = arith.constant 0 : i32
    %18 = arith.cmpi ne, %17, %c0_i32_11 : i32
    scf.if %18 {
      %c0_12 = arith.constant 0 : index
      %c0_13 = arith.constant 0 : index
      %19 = vector.load %arg8[%c0_12, %c0_13] : memref<8x128xf32, #tpu.memory_space<vmem>>, vector<8x128xf32>
      %20 = vector.extract_strided_slice %19 {offsets = [0, 0], sizes = [1, 128], strides = [1, 1]} : vector<8x128xf32> to vector<1x128xf32>
      %21 = vector.extract_strided_slice %19 {offsets = [2, 0], sizes = [1, 128], strides = [1, 1]} : vector<8x128xf32> to vector<1x128xf32>
      %22 = arith.addf %20, %21 : vector<1x128xf32>
      %23 = vector.extract_strided_slice %19 {offsets = [1, 0], sizes = [1, 128], strides = [1, 1]} : vector<8x128xf32> to vector<1x128xf32>
      %24 = arith.divf %22, %23 : vector<1x128xf32>
      %cst_14 = arith.constant 1.401300e-45 : f32
      %25 = vector.broadcast %cst_14 : f32 to vector<1x128xf32>
      %26 = arith.addf %24, %25 : vector<1x128xf32>
      %27 = math.log %26 : vector<1x128xf32>
      %c0_15 = arith.constant 0 : index
      %c0_16 = arith.constant 0 : index
      %28 = vector.load %arg5[%c0_15, %c0_16] : memref<1x128xf32, #tpu.memory_space<vmem>>, vector<1x128xf32>
      %29 = arith.subf %28, %27 : vector<1x128xf32>
      %c0_17 = arith.constant 0 : index
      %c0_18 = arith.constant 0 : index
      %30 = vector.load %arg6[%c0_17, %c0_18] : memref<1x128xf32, #tpu.memory_space<vmem>>, vector<1x128xf32>
      %31 = arith.mulf %29, %30 : vector<1x128xf32>
      %c0_19 = arith.constant 0 : index
      %c0_20 = arith.constant 0 : index
      %32 = vector.load %arg7[%c0_19, %c0_20] : memref<1x128xf32, #tpu.memory_space<vmem>>, vector<1x128xf32>
      tpu.vector_store %arg7[%c0_19, %c0_20], %31 {strides = array<i32>} : memref<1x128xf32, #tpu.memory_space<vmem>>, vector<1x128xf32>,
    } else {
    }
    return
  }
  func.func @transform_0(%arg0: i32, %arg1: i32) -> (i32, i32) {
    %c0_i32 = arith.constant 0 : i32
    %c0_i32_0 = arith.constant 0 : i32
    return %c0_i32, %arg1 : i32, i32
  }
  func.func @transform_1(%arg0: i32, %arg1: i32) -> (i32, i32) {
    %c0_i32 = arith.constant 0 : i32
    %c0_i32_0 = arith.constant 0 : i32
    return %arg1, %c0_i32 : i32, i32
  }
  func.func @transform_2(%arg0: i32, %arg1: i32) -> (i32, i32) {
    %c0_i32 = arith.constant 0 : i32
    %c0_i32_0 = arith.constant 0 : i32
    return %c0_i32, %arg0 : i32, i32
  }
  func.func @transform_3(%arg0: i32, %arg1: i32) -> (i32, i32) {
    %c0_i32 = arith.constant 0 : i32
    %c0_i32_0 = arith.constant 0 : i32
    return %c0_i32, %arg0 : i32, i32
  }
  func.func @transform_4(%arg0: i32, %arg1: i32) -> (i32, i32) {
    %c0_i32 = arith.constant 0 : i32
    %c0_i32_0 = arith.constant 0 : i32
    return %c0_i32, %arg0 : i32, i32
  }
  func.func @transform_5(%arg0: i32, %arg1: i32) -> (i32, i32) {
    %c0_i32 = arith.constant 0 : i32
    %c0_i32_0 = arith.constant 0 : i32
    return %c0_i32, %arg0 : i32, i32
  }
}

</mosaic_0001>

<llo_original>
// kernel: negative_log_likelihood.1
$region0: #{negative_log_likelihood.1}
  #allocation0 [shape = 'u32[]', space=smem, size = 0x4, offset = 0x4, fixed_abs, tag = 'smem constant byte address 0x4 - core index']
  #allocation1 [shape = 'u32[72,128]{1,0:T(1,128)}', space=vmem, size = 0x9000, scoped, tag = 'internal scratch']
  #allocation2 [shape = 'f32[8,128]{1,0:T(8,128)}', space=vmem, size = 0x1000, scoped, tag = 'scratch operand']
  %s0 = inlined_call_operand.vmem [shape: bf16[8,128], index: 0, kind: input, shape index: {}]
  %s1 = inlined_call_operand.vmem [shape: f32[128,1], index: 1, kind: input, shape index: {}]
  %s2 = inlined_call_operand.vmem [shape: f32[1,128], index: 2, kind: input, shape index: {}]
  %s3 = inlined_call_operand.vmem [shape: f32[1,128], index: 3, kind: input, shape index: {}]
  %s4 = inlined_call_operand.vmem [shape: f32[1,128], index: 4, kind: input, shape index: {}]
  %s5 = inlined_call_operand.vmem [shape: f32[1,128], index: 5, kind: output, shape index: {}]
  %s6 = sld [smem:[#allocation0]]
  $region38: #{negative_log_likelihood.1} parent=0
    _
  %s8 = ssub.s32 1, %s6
  %s9 = scalar_select 0, %s8, %s6
  // Predicated region
  $region2: #{negative_log_likelihood.1} parent=0 // pred_check
    _
  $region3: #{negative_log_likelihood.1} parent=0 // pred_check_branch
    %11 = sbr.rel (0) target = $region5
  $region4: #{negative_log_likelihood.1} parent=0 // pred_region
    _
  $region5: #{negative_log_likelihood.1} parent=0 // pred_fallthru
    _
  // Predicated region
  $region6: #{negative_log_likelihood.1} parent=0 // pred_check
    _
  $region7: #{negative_log_likelihood.1} parent=0 // pred_check_branch
    %13 = sbr.rel (0) target = $region9
  $region8: #{negative_log_likelihood.1} parent=0 // pred_region
    _
  $region9: #{negative_log_likelihood.1} parent=0 // pred_fallthru
    _
  // Predicated region
  $region10: #{negative_log_likelihood.1} parent=0 // pred_check
    _
  $region11: #{negative_log_likelihood.1} parent=0 // pred_check_branch
    %15 = sbr.rel (0) target = $region13
  $region12: #{negative_log_likelihood.1} parent=0 // pred_region
    _
  $region13: #{negative_log_likelihood.1} parent=0 // pred_fallthru
    _
  // Predicated region
  $region14: #{negative_log_likelihood.1} parent=0 // pred_check
    _
  $region15: #{negative_log_likelihood.1} parent=0 // pred_check_branch
    %17 = sbr.rel (0) target = $region17
  $region16: #{negative_log_likelihood.1} parent=0 // pred_region
    _
  $region17: #{negative_log_likelihood.1} parent=0 // pred_fallthru
    _
  // Predicated region
  $region18: #{negative_log_likelihood.1} parent=0 // pred_check
    _
  $region19: #{negative_log_likelihood.1} parent=0 // pred_check_branch
    %19 = sbr.rel (0) target = $region21
  $region20: #{negative_log_likelihood.1} parent=0 // pred_region
    _
  $region21: #{negative_log_likelihood.1} parent=0 // pred_fallthru
    _
  %p20 = scmp.eq.s32.totalorder 0, 0
  // Predicated region
  $region22: #{negative_log_likelihood.1} parent=0 // pred_check
    %p21 = pneg %p20
  $region23: #{negative_log_likelihood.1} parent=0 // pred_check_branch
    %23 = sbr.rel (%p21) target = $region25
  $region24: #{negative_log_likelihood.1} parent=0 // pred_region
    %24 = vst [vmem:[#allocation2] sm:$0xff] 0.0
  $region25: #{negative_log_likelihood.1} parent=0 // pred_fallthru
    _
  %v25 = vld [vmem:[%s1] sm:$0xff]
  %v26 = vld [vmem:[%s1 + $0x8] sm:$0xff]
  %v27 = vld [vmem:[%s1 + $0x10] sm:$0xff]
  %v28 = vld [vmem:[%s1 + $0x18] sm:$0xff]
  %v29 = vld [vmem:[%s1 + $0x20] sm:$0xff]
  %v30 = vld [vmem:[%s1 + $0x28] sm:$0xff]
  %v31 = vld [vmem:[%s1 + $0x30] sm:$0xff]
  %v32 = vld [vmem:[%s1 + $0x38] sm:$0xff]
  %v33 = vld [vmem:[%s1 + $0x40] sm:$0xff]
  %v34 = vld [vmem:[%s1 + $0x48] sm:$0xff]
  %v35 = vld [vmem:[%s1 + $0x50] sm:$0xff]
  %v36 = vld [vmem:[%s1 + $0x58] sm:$0xff]
  %v37 = vld [vmem:[%s1 + $0x60] sm:$0xff]
  %v38 = vld [vmem:[%s1 + $0x68] sm:$0xff]
  %v39 = vld [vmem:[%s1 + $0x70] sm:$0xff]
  %v40 = vld [vmem:[%s1 + $0x78] sm:$0xff]
  %v41 = vld [vmem:[%s2] sm:$0x1]
  %v43 = vperm.slane %v41, 0
  %46 = vset.pattern.permute.xlu0 0
  %47 = vperm.xlu0 %46, %v25
  %v48 = vpop.permute.xlu0 %47
  %51 = vset.pattern.permute.xlu0 0
  %52 = vperm.xlu0 %51, %v26
  %v53 = vpop.permute.xlu0 %52
  %56 = vset.pattern.permute.xlu0 0
  %57 = vperm.xlu0 %56, %v27
  %v58 = vpop.permute.xlu0 %57
  %61 = vset.pattern.permute.xlu0 0
  %62 = vperm.xlu0 %61, %v28
  %v63 = vpop.permute.xlu0 %62
  %66 = vset.pattern.permute.xlu0 0
  %67 = vperm.xlu0 %66, %v29
  %v68 = vpop.permute.xlu0 %67
  %71 = vset.pattern.permute.xlu0 0
  %72 = vperm.xlu0 %71, %v30
  %v73 = vpop.permute.xlu0 %72
  %76 = vset.pattern.permute.xlu0 0
  %77 = vperm.xlu0 %76, %v31
  %v78 = vpop.permute.xlu0 %77
  %81 = vset.pattern.permute.xlu0 0
  %82 = vperm.xlu0 %81, %v32
  %v83 = vpop.permute.xlu0 %82
  %86 = vset.pattern.permute.xlu0 0
  %87 = vperm.xlu0 %86, %v33
  %v88 = vpop.permute.xlu0 %87
  %91 = vset.pattern.permute.xlu0 0
  %92 = vperm.xlu0 %91, %v34
  %v93 = vpop.permute.xlu0 %92
  %96 = vset.pattern.permute.xlu0 0
  %97 = vperm.xlu0 %96, %v35
  %v98 = vpop.permute.xlu0 %97
  %101 = vset.pattern.permute.xlu0 0
  %102 = vperm.xlu0 %101, %v36
  %v103 = vpop.permute.xlu0 %102
  %106 = vset.pattern.permute.xlu0 0
  %107 = vperm.xlu0 %106, %v37
  %v108 = vpop.permute.xlu0 %107
  %111 = vset.pattern.permute.xlu0 0
  %112 = vperm.xlu0 %111, %v38
  %v113 = vpop.permute.xlu0 %112
  %116 = vset.pattern.permute.xlu0 0
  %117 = vperm.xlu0 %116, %v39
  %v118 = vpop.permute.xlu0 %117
  %121 = vset.pattern.permute.xlu0 0
  %122 = vperm.xlu0 %121, %v40
  %v123 = vpop.permute.xlu0 %122
  %vm125 = vcmp.le.f32.partialorder %v43, %v48
  %vm126 = vcmp.le.f32.partialorder %v43, %v53
  %vm127 = vcmp.le.f32.partialorder %v43, %v58
  %vm128 = vcmp.le.f32.partialorder %v43, %v63
  %vm129 = vcmp.le.f32.partialorder %v43, %v68
  %vm130 = vcmp.le.f32.partialorder %v43, %v73
  %vm131 = vcmp.le.f32.partialorder %v43, %v78
  %vm132 = vcmp.le.f32.partialorder %v43, %v83
  %vm133 = vcmp.le.f32.partialorder %v43, %v88
  %vm134 = vcmp.le.f32.partialorder %v43, %v93
  %vm135 = vcmp.le.f32.partialorder %v43, %v98
  %vm136 = vcmp.le.f32.partialorder %v43, %v103
  %vm137 = vcmp.le.f32.partialorder %v43, %v108
  %vm138 = vcmp.le.f32.partialorder %v43, %v113
  %vm139 = vcmp.le.f32.partialorder %v43, %v118
  %vm140 = vcmp.le.f32.partialorder %v43, %v123
  %v141 = vsel %vm125, 1, 0
  %v142 = vsel %vm126, 1, 0
  %v143 = vsel %vm127, 1, 0
  %v144 = vsel %vm128, 1, 0
  %v145 = vsel %vm129, 1, 0
  %v146 = vsel %vm130, 1, 0
  %v147 = vsel %vm131, 1, 0
  %v148 = vsel %vm132, 1, 0
  %v149 = vsel %vm133, 1, 0
  %v150 = vsel %vm134, 1, 0
  %v151 = vsel %vm135, 1, 0
  %v152 = vsel %vm136, 1, 0
  %v153 = vsel %vm137, 1, 0
  %v154 = vsel %vm138, 1, 0
  %v155 = vsel %vm139, 1, 0
  %v156 = vsel %vm140, 1, 0
  %v157 = vcvt.s32.f32 %v141
  %v158 = vcvt.s32.f32 %v142
  %v159 = vcvt.s32.f32 %v143
  %v160 = vcvt.s32.f32 %v144
  %v161 = vcvt.s32.f32 %v145
  %v162 = vcvt.s32.f32 %v146
  %v163 = vcvt.s32.f32 %v147
  %v164 = vcvt.s32.f32 %v148
  %v165 = vcvt.s32.f32 %v149
  %v166 = vcvt.s32.f32 %v150
  %v167 = vcvt.s32.f32 %v151
  %v168 = vcvt.s32.f32 %v152
  %v169 = vcvt.s32.f32 %v153
  %v170 = vcvt.s32.f32 %v154
  %v171 = vcvt.s32.f32 %v155
  %v172 = vcvt.s32.f32 %v156
  %v173 = vpack.c.bf16 %v158, %v157
  %v174 = vpack.c.bf16 %v160, %v159
  %v175 = vpack.c.bf16 %v162, %v161
  %v176 = vpack.c.bf16 %v164, %v163
  %v177 = vpack.c.bf16 %v166, %v165
  %v178 = vpack.c.bf16 %v168, %v167
  %v179 = vpack.c.bf16 %v170, %v169
  %v180 = vpack.c.bf16 %v172, %v171
  %v181 = vld [vmem:[#allocation2] sm:$0xff]
  %v182 = vld [vmem:[%s0] sm:$0xf]
  %183 = vmatpush.bf16.msra.mxu0 %v180
  %184 = vmatpush.bf16.msra.mxu0 %v179
  %185 = vmatpush.bf16.msra.mxu0 %v178
  %186 = vmatpush.bf16.msra.mxu0 %v177
  %187 = vmatpush.bf16.msra.mxu0 %v176
  %188 = vmatpush.bf16.msra.mxu0 %v175
  %189 = vmatpush.bf16.msra.mxu0 %v174
  %190 = vmatpush.bf16.msra.mxu0 %v173
  %191 = vmatmul.bf16.gmra.mxu0 %v182
  %v192 = vpop.f32.mrf.mxu0
  %v193 = vadd.f32 0.0, %v192
  %v194 = vpop.f32.mrf.mxu0
  %195 = vdwg.mxu0
  %v196 = vadd.f32 %v181, %v193
  %197 = vst [vmem:[#allocation2] sm:$0xff] %v196
  // Predicated region
  $region26: #{negative_log_likelihood.1} parent=0 // pred_check
    %p198 = pneg %p20
  $region27: #{negative_log_likelihood.1} parent=0 // pred_check_branch
    %200 = sbr.rel (%p198) target = $region29
  $region28: #{negative_log_likelihood.1} parent=0 // pred_region
    %v201 = vld [vmem:[#allocation2] sm:$0xff]
    %v203 = vrot.slane %v201, 2
    %v205 = vadd.f32 %v201, %v203
    %v206 = vrot.slane %v201, 1
    %v208 = vrcp.pop %v206
    %v209 = vmul.f32 %v206, %v208
    %v210 = vsub.f32 1.0, %v209
    %v211 = vmul.f32 %v208, %v210
    %v212 = vadd.f32 %v208, %v211
    %vm213 = vweird.f32 %v206
    %vm214 = vweird.f32 %v208
    %vm215 = vmor %vm213, %vm214
    %v216 = vsel %vm215, %v208, %v212
    %v217 = vand.u32 2147483647, %v206
    %vm218 = vcmp.eq.f32.partialorder %v217, 8.507059e+37
    %v219 = vand.u32 %v206, 2147483648
    %v220 = vor.u32 1.1754944e-38, %v219
    %v221 = vsel %vm218, %v220, %v216
    %v222 = vmul.f32 %v205, %v221
    %v223 = vadd.f32 %v222, 1e-45
    %v224 = vlog2.pop %v223
    %v225 = vmul.f32 %v224, 0.6931472
    %v226 = vld [vmem:[%s3] sm:$0x1]
    %v227 = vsub.f32 %v226, %v225
    %v228 = vld [vmem:[%s4] sm:$0x1]
    %v229 = vmul.f32 %v227, %v228
    %230 = vst [vmem:[%s5] sm:$0x1] %v229
  $region29: #{negative_log_likelihood.1} parent=0 // pred_fallthru
    _
  // Predicated region
  $region30: #{negative_log_likelihood.1} parent=0 // pred_check
    _
  $region31: #{negative_log_likelihood.1} parent=0 // pred_check_branch
    %232 = sbr.rel (0) target = $region33
  $region32: #{negative_log_likelihood.1} parent=0 // pred_region
    _
  $region33: #{negative_log_likelihood.1} parent=0 // pred_fallthru
    _
  // Predicated region
  $region34: #{negative_log_likelihood.1} parent=0 // pred_check
    _
  $region35: #{negative_log_likelihood.1} parent=0 // pred_check_branch
    %234 = sbr.rel (0) target = $region37
  $region36: #{negative_log_likelihood.1} parent=0 // pred_region
    _
  $region37: #{negative_log_likelihood.1} parent=0 // pred_fallthru
    _

</llo_original>
